<compile_context>
chip_gen: v6e
topology: v6e:2x2x1
jax: 0.10.0
libtpu: 0.0.40
codegen_flags: <defaults>
</compile_context>

<pallas_src>
import functools

import jax
import jax.numpy as jnp
from jax.experimental import pallas as pl
from jax.experimental.pallas import tpu as pltpu


def _round_up(x, m):
    return (x + m - 1) // m * m


# ---------------------------------------------------------------------------
# Kernel A: per-pixel cross entropy + softmax prob of the target class.
#   score tile : (C, T) f32   (classes on sublanes, pixels on lanes)
#   target tile: (1, T) int32
#   loss  out  : (1, T) f32   (0 for ignored pixels)
#   prob  out  : (1, T) f32   (sentinel 2.0 for ignored pixels -> never selected)
# ---------------------------------------------------------------------------
def _ce_prob_kernel(score_ref, tgt_ref, loss_ref, prob_ref, *, ignore_label):
    s = score_ref[...].astype(jnp.float32)                    # (C, T)
    t = tgt_ref[...]                                          # (1, T) int32
    valid = t != ignore_label
    t_safe = jnp.where(valid, t, 0)

    # numerically stable softmax / log-softmax over the class (sublane) axis
    m = jnp.max(s, axis=0, keepdims=True)                     # (1, T)
    e = jnp.exp(s - m)                                        # (C, T)  (EUP)
    z = jnp.sum(e, axis=0, keepdims=True)                     # (1, T)

    # gather target-class logit via a one-hot compare (no vector gather on TPU)
    cls = jax.lax.broadcasted_iota(jnp.int32, s.shape, 0)     # (C, T)
    onehot = (cls == t_safe).astype(jnp.float32)              # (C, T)
    s_t = jnp.sum(s * onehot, axis=0, keepdims=True)          # (1, T) target logit

    loss = jnp.log(z) + m - s_t                               # CE, reduction='none'
    prob = jnp.exp(s_t - m) / z                               # softmax prob of target

    loss_ref[...] = jnp.where(valid, loss, 0.0)
    prob_ref[...] = jnp.where(valid, prob, 2.0)               # 2.0 > any prob/threshold


# ---------------------------------------------------------------------------
# Kernel B: tiled reduction of sum(loss where prob < threshold) and the count.
# Accumulates directly into (1,1) resident outputs (constant index map),
# zeroed under pl.when on the first grid step.  Threshold is an SMEM scalar.
# ---------------------------------------------------------------------------
def _ohem_mean_kernel(thr_ref, loss_ref, prob_ref, lsum_ref, cnt_ref):
    i = pl.program_id(0)

    @pl.when(i == 0)
    def _():
        lsum_ref[...] = jnp.zeros_like(lsum_ref)
        cnt_ref[...] = jnp.zeros_like(cnt_ref)

    thr = thr_ref[0]                                          # SMEM scalar
    keep = (prob_ref[...] < thr).astype(jnp.float32)          # (1, T)
    lsum_ref[...] += jnp.sum(loss_ref[...] * keep, axis=1, keepdims=True)
    cnt_ref[...] += jnp.sum(keep, axis=1, keepdims=True)


# ---------------------------------------------------------------------------
# Wrapper matching OhemCrossEntropy.forward
# ---------------------------------------------------------------------------
def ohem_cross_entropy(score, target, *, ignore_label=-1, thres=0.7,
                       min_kept=100000, weight=None, tile=2048):
    if weight is not None:
        # TODO(synk): per-class weight of nn.CrossEntropyLoss not implemented.
        raise NotImplementedError("class weights are not supported")
    min_kept = max(1, min_kept)

    b, c, ph, pw = score.shape
    _, h, w = target.shape
    if (ph, pw) != (h, w):
        # F.upsample(..., mode='bilinear') equivalent (align_corners=False).
        score = jax.image.resize(score, (b, c, h, w), method="bilinear")

    n = b * h * w
    target = target.astype(jnp.int32)

    # lane-dense layout: (C, N) with the pixel axis on lanes.
    score2 = jnp.transpose(score, (1, 0, 2, 3)).reshape(c, n)
    tgt1 = target.reshape(n)

    tile = min(tile, _round_up(n, 128))
    npad = _round_up(n, tile)
    if npad != n:
        score2 = jnp.pad(score2, ((0, 0), (0, npad - n)))
        tgt1 = jnp.pad(tgt1, (0, npad - n), constant_values=ignore_label)
    tgt2 = tgt1.reshape(1, npad)

    grid = (npad // tile,)

    # --- pass 1: per-pixel CE + target-class prob (tiled, fully parallel) ----
    loss, prob = pl.pallas_call(
        functools.partial(_ce_prob_kernel, ignore_label=ignore_label),
        grid=grid,
        in_specs=[
            pl.BlockSpec((c, tile), lambda i: (0, i)),
            pl.BlockSpec((1, tile), lambda i: (0, i)),
        ],
        out_specs=[
            pl.BlockSpec((1, tile), lambda i: (0, i)),
            pl.BlockSpec((1, tile), lambda i: (0, i)),
        ],
        out_shape=(
            jax.ShapeDtypeStruct((1, npad), jnp.float32),
            jax.ShapeDtypeStruct((1, npad), jnp.float32),
        ),
        compiler_params=pltpu.CompilerParams(dimension_semantics=("parallel",)),
    )(score2, tgt2)

    prob_flat = prob.reshape(npad)

    # --- OHEM threshold (k-th order statistic) -------------------------------
    # TODO(synk): the global sort / k-th order statistic has no clean Pallas
    # equivalent; it is done with XLA here (ignored/padded pixels sort last).
    n_valid = jnp.sum((tgt1 != ignore_label).astype(jnp.int32))
    k = jnp.clip(jnp.minimum(jnp.int32(min_kept), n_valid - 1), 0, npad - 1)
    min_value = jnp.sort(prob_flat)[k]
    threshold = jnp.maximum(min_value, jnp.float32(thres)).reshape(1)

    # --- pass 2: masked mean of the kept hard examples (tiled reduction) -----
    lsum, cnt = pl.pallas_call(
        _ohem_mean_kernel,
        grid=grid,
        in_specs=[
            pl.BlockSpec(memory_space=pltpu.MemorySpace.SMEM),   # threshold scalar
            pl.BlockSpec((1, tile), lambda i: (0, i)),
            pl.BlockSpec((1, tile), lambda i: (0, i)),
        ],
        out_specs=[
            pl.BlockSpec((1, 1), lambda i: (0, 0)),
            pl.BlockSpec((1, 1), lambda i: (0, 0)),
        ],
        out_shape=(
            jax.ShapeDtypeStruct((1, 1), jnp.float32),
            jax.ShapeDtypeStruct((1, 1), jnp.float32),
        ),
        compiler_params=pltpu.CompilerParams(dimension_semantics=("arbitrary",)),
    )(threshold, loss, prob)

    return lsum[0, 0] / cnt[0, 0]


class OhemCrossEntropy:
    """Mirrors the PyTorch module's constructor/forward."""

    def __init__(self, ignore_label=-1, thres=0.7, min_kept=100000, weight=None):
        self.ignore_label = ignore_label
        self.thresh = thres
        self.min_kept = max(1, min_kept)
        self.weight = weight

    def __call__(self, score, target, **kwargs):
        return ohem_cross_entropy(
            score, target,
            ignore_label=self.ignore_label, thres=self.thresh,
            min_kept=self.min_kept, weight=self.weight)


# ---------------------------------------------------------------------------
# Pure-JAX reference (for the self-test)
# ---------------------------------------------------------------------------
def _ohem_ref(score, target, ignore_label=-1, thres=0.7, min_kept=100000):
    min_kept = max(1, min_kept)
    b, c, h, w = score.shape
    logp = jax.nn.log_softmax(score.astype(jnp.float32), axis=1)
    tgt = target.astype(jnp.int32)
    valid = (tgt != ignore_label).reshape(-1)
    t_safe = jnp.where(tgt == ignore_label, 0, tgt)
    oh = jax.nn.one_hot(t_safe, c, axis=1, dtype=jnp.float32)      # (B,C,H,W)
    ce = -(logp * oh).sum(axis=1).reshape(-1)
    pr = (jnp.exp(logp) * oh).sum(axis=1).reshape(-1)
    n_valid = valid.sum()
    k = jnp.minimum(min_kept, n_valid - 1)
    min_value = jnp.sort(jnp.where(valid, pr, jnp.inf))[k]
    threshold = jnp.maximum(min_value, thres)
    keep = valid & (pr < threshold)
    return jnp.sum(jnp.where(keep, ce, 0.0)) / jnp.sum(keep)


if __name__ == "__main__":
    key = jax.random.PRNGKey(0)
    k1, k2, k3 = jax.random.split(key, 3)

    B, C, H, W = 2, 8, 16, 16
    score = jax.random.normal(k1, (B, C, H, W), dtype=jnp.float32) * 2.0
    labels = jax.random.randint(k2, (B, H, W), 0, C)
    ignore = jax.random.uniform(k3, (B, H, W)) < 0.2
    target = jnp.where(ignore, -1, labels).astype(jnp.int32)

    # small min_kept: exercises the thres branch
    crit = OhemCrossEntropy(ignore_label=-1, thres=0.7, min_kept=50)
    out = crit(score, target)
    jax.block_until_ready(out)
    ref = _ohem_ref(score, target, ignore_label=-1, thres=0.7, min_kept=50)
    assert jnp.allclose(out, ref, rtol=1e-5, atol=1e-5), (out, ref)

    # default min_kept (larger than the number of valid pixels)
    crit2 = OhemCrossEntropy(ignore_label=-1, thres=0.7, min_kept=100000)
    out2 = crit2(score, target)
    jax.block_until_ready(out2)
    ref2 = _ohem_ref(score, target, ignore_label=-1, thres=0.7, min_kept=100000)
    assert jnp.allclose(out2, ref2, rtol=1e-5, atol=1e-5), (out2, ref2)

    print("KERNEL_OK")
</pallas_src>

<mosaic_0001>
module attributes {stable_mosaic.version = 11 : i64} {
  func.func @_ce_prob_kernel(%arg0: i32, %arg1: memref<8x512xf32, #tpu.memory_space<vmem>>, %arg2: memref<1x512xi32, #tpu.memory_space<vmem>>, %arg3: memref<1x512xf32, #tpu.memory_space<vmem>>, %arg4: memref<1x512xf32, #tpu.memory_space<vmem>>) attributes {dimension_semantics = [#tpu.dimension_semantics<parallel>], iteration_bounds = array<i64: 1>, scalar_prefetch = 0 : i64, scratch_operands = 0 : i64, tpu.core_type = #tpu.core_type<tc>, window_params = [{transform_indices = @transform_0, window_bounds = array<i64: 8, 512>}, {transform_indices = @transform_1, window_bounds = array<i64: 1, 512>}, {transform_indices = @transform_2, window_bounds = array<i64: 1, 512>}, {transform_indices = @transform_3, window_bounds = array<i64: 1, 512>}]} {
    %c0 = arith.constant 0 : index
    %c0_0 = arith.constant 0 : index
    %0 = vector.load %arg1[%c0, %c0_0] : memref<8x512xf32, #tpu.memory_space<vmem>>, vector<8x512xf32>
    %c0_1 = arith.constant 0 : index
    %c0_2 = arith.constant 0 : index
    %1 = vector.load %arg2[%c0_1, %c0_2] : memref<1x512xi32, #tpu.memory_space<vmem>>, vector<1x512xi32>
    %c-1_i32 = arith.constant -1 : i32
    %2 = vector.broadcast %c-1_i32 : i32 to vector<1x512xi32>
    %3 = arith.cmpi ne, %1, %2 : vector<1x512xi32>
    %c0_i32 = arith.constant 0 : i32
    %4 = vector.broadcast %c0_i32 : i32 to vector<1x512xi32>
    %5 = arith.select %3, %1, %4 : vector<1x512xi1>, vector<1x512xi32>
    %cst = arith.constant dense<0xFF800000> : vector<512xf32>
    %6 = vector.multi_reduction <maximumf>, %0, %cst [0] : vector<8x512xf32> to vector<512xf32>
    %7 = vector.shape_cast %6 : vector<512xf32> to vector<1x512xf32>
    %8 = vector.broadcast %7 : vector<1x512xf32> to vector<8x512xf32>
    %9 = arith.subf %0, %8 : vector<8x512xf32>
    %10 = math.exp %9 : vector<8x512xf32>
    %cst_3 = arith.constant dense<0.000000e+00> : vector<512xf32>
    %11 = vector.multi_reduction <add>, %10, %cst_3 [0] : vector<8x512xf32> to vector<512xf32>
    %12 = vector.shape_cast %11 : vector<512xf32> to vector<1x512xf32>
    %13 = tpu.iota {dimensions = array<i32: 0>} : vector<8x512xi32>
    %14 = vector.broadcast %5 : vector<1x512xi32> to vector<8x512xi32>
    %15 = arith.cmpi eq, %13, %14 : vector<8x512xi32>
    %16 = arith.extui %15 : vector<8x512xi1> to vector<8x512xi32>
    %17 = arith.sitofp %16 : vector<8x512xi32> to vector<8x512xf32>
    %18 = arith.mulf %0, %17 : vector<8x512xf32>
    %cst_4 = arith.constant dense<0.000000e+00> : vector<512xf32>
    %19 = vector.multi_reduction <add>, %18, %cst_4 [0] : vector<8x512xf32> to vector<512xf32>
    %20 = vector.shape_cast %19 : vector<512xf32> to vector<1x512xf32>
    %21 = math.log %12 : vector<1x512xf32>
    %22 = arith.addf %21, %7 : vector<1x512xf32>
    %23 = arith.subf %22, %20 : vector<1x512xf32>
    %24 = arith.subf %20, %7 : vector<1x512xf32>
    %25 = math.exp %24 : vector<1x512xf32>
    %26 = arith.divf %25, %12 : vector<1x512xf32>
    %cst_5 = arith.constant 0.000000e+00 : f32
    %27 = vector.broadcast %cst_5 : f32 to vector<1x512xf32>
    %28 = arith.select %3, %23, %27 : vector<1x512xi1>, vector<1x512xf32>
    %c0_6 = arith.constant 0 : index
    %c0_7 = arith.constant 0 : index
    %29 = vector.load %arg3[%c0_6, %c0_7] : memref<1x512xf32, #tpu.memory_space<vmem>>, vector<1x512xf32>
    tpu.vector_store %arg3[%c0_6, %c0_7], %28 {strides = array<i32>} : memref<1x512xf32, #tpu.memory_space<vmem>>, vector<1x512xf32>,
    %cst_8 = arith.constant 2.000000e+00 : f32
    %30 = vector.broadcast %cst_8 : f32 to vector<1x512xf32>
    %31 = arith.select %3, %26, %30 : vector<1x512xi1>, vector<1x512xf32>
    %c0_9 = arith.constant 0 : index
    %c0_10 = arith.constant 0 : index
    %32 = vector.load %arg4[%c0_9, %c0_10] : memref<1x512xf32, #tpu.memory_space<vmem>>, vector<1x512xf32>
    tpu.vector_store %arg4[%c0_9, %c0_10], %31 {strides = array<i32>} : memref<1x512xf32, #tpu.memory_space<vmem>>, vector<1x512xf32>,
    return
  }
  func.func @transform_0(%arg0: i32) -> (i32, i32) {
    %c0_i32 = arith.constant 0 : i32
    %c0_i32_0 = arith.constant 0 : i32
    return %c0_i32, %arg0 : i32, i32
  }
  func.func @transform_1(%arg0: i32) -> (i32, i32) {
    %c0_i32 = arith.constant 0 : i32
    %c0_i32_0 = arith.constant 0 : i32
    return %c0_i32, %arg0 : i32, i32
  }
  func.func @transform_2(%arg0: i32) -> (i32, i32) {
    %c0_i32 = arith.constant 0 : i32
    %c0_i32_0 = arith.constant 0 : i32
    return %c0_i32, %arg0 : i32, i32
  }
  func.func @transform_3(%arg0: i32) -> (i32, i32) {
    %c0_i32 = arith.constant 0 : i32
    %c0_i32_0 = arith.constant 0 : i32
    return %c0_i32, %arg0 : i32, i32
  }
}

</mosaic_0001>

<llo_original>
// kernel: tpu_custom_call.1
$region0: #{tpu_custom_call.1}
  #allocation0 [shape = 'u32[]', space=smem, size = 0x4, offset = 0x4, fixed_abs, tag = 'smem constant byte address 0x4 - core index']
  #allocation1 [shape = 'u32[144,128]{1,0:T(1,128)}', space=vmem, size = 0x12000, scoped, tag = 'internal scratch']
  %s0 = inlined_call_operand.hbm [shape: f32[8,512], index: 0, kind: input, shape index: {}]
  %s1 = inlined_call_operand.hbm [shape: s32[1,512], index: 1, kind: input, shape index: {}]
  %s2 = inlined_call_operand.hbm [shape: f32[1,512], index: 2, kind: output, shape index: {0}]
  %s3 = inlined_call_operand.hbm [shape: f32[1,512], index: 3, kind: output, shape index: {1}]
  %4 = xla_tuple %s2, %s3
  %s5 = sld [smem:[#allocation0]]
  $region34: #{tpu_custom_call.1} parent=0
    _
  %s7 = ssub.s32 1, %s5
  %s8 = scalar_select 0, %s7, %s5
  $region1: #{tpu_custom_call.1} parent=0
    #allocation2 [shape = 'u8[16384]{0}', space=vmem, size = 0x4000, scoped, tag = 'input window, operand 0, single buffered']
    #allocation3 [shape = 's32[1]{0}', space=sflag, size = 0x4, scoped, tag = 'scoped memory for tpu_custom_call.1']
    #allocation4 [shape = 's32[1]{0}', space=sflag, size = 0x4, scoped, tag = 'scoped memory for tpu_custom_call.1']
    #allocation5 [shape = 'u8[2048]{0}', space=vmem, size = 0x800, scoped, tag = 'input window, operand 1, single buffered']
    #allocation6 [shape = 's32[1]{0}', space=sflag, size = 0x4, scoped, tag = 'scoped memory for tpu_custom_call.1']
    #allocation7 [shape = 'u8[2048]{0}', space=vmem, size = 0x800, scoped, tag = 'output window, operand 0, single buffered']
    #allocation8 [shape = 'u8[2048]{0}', space=vmem, size = 0x800, scoped, tag = 'output window, operand 1, single buffered']
    #allocation9 [shape = 's32[1]{0}', space=sflag, size = 0x4, scoped, tag = 'scoped memory for tpu_custom_call.1']
    %9 = vsyncpa [#allocation3], 0
    %10 = vsyncpa [#allocation6], 0
    %11 = vsyncpa [#allocation4], 0
    %12 = vsyncpa [#allocation9], 0
    // Predicated region
    $region2: #{tpu_custom_call.1} parent=1 // pred_check
      _
    $region3: #{tpu_custom_call.1} parent=1 // pred_check_branch
      %14 = sbr.rel (0) target = $region5
    $region4: #{tpu_custom_call.1} parent=1 // pred_region
      %s16 = ssub.s32 512, 512
      %17 = vsyncadd [#allocation3], %s16
      %s19 = sshll.u32 [#allocation2], 4
      %s20 = int_to_ptr.vmem [resolvable:$true] %s19
      %22 = dma.hbm_to_vmem [thread:$0]  %s0, 512, %s20, [#allocation3]
    $region5: #{tpu_custom_call.1} parent=1 // pred_fallthru
      _
    // Predicated region
    $region6: #{tpu_custom_call.1} parent=1 // pred_check
      _
    $region7: #{tpu_custom_call.1} parent=1 // pred_check_branch
      %24 = sbr.rel (0) target = $region9
    $region8: #{tpu_custom_call.1} parent=1 // pred_region
      %s26 = ssub.s32 64, 64
      %27 = vsyncadd [#allocation6], %s26
      %s29 = sshll.u32 [#allocation5], 4
      %s30 = int_to_ptr.vmem [resolvable:$true] %s29
      %32 = dma.hbm_to_vmem [thread:$0]  %s1, 64, %s30, [#allocation6]
    $region9: #{tpu_custom_call.1} parent=1 // pred_fallthru
      _
    // Predicated region
    $region10: #{tpu_custom_call.1} parent=1 // pred_check
      _
    $region11: #{tpu_custom_call.1} parent=1 // pred_check_branch
      %34 = sbr.rel (0) target = $region13
    $region12: #{tpu_custom_call.1} parent=1 // pred_region
      %35 = dma.done [#allocation3], 512
    $region13: #{tpu_custom_call.1} parent=1 // pred_fallthru
      _
    // Predicated region
    $region14: #{tpu_custom_call.1} parent=1 // pred_check
      _
    $region15: #{tpu_custom_call.1} parent=1 // pred_check_branch
      %37 = sbr.rel (0) target = $region17
    $region16: #{tpu_custom_call.1} parent=1 // pred_region
      %38 = dma.done [#allocation6], 64
    $region17: #{tpu_custom_call.1} parent=1 // pred_fallthru
      _
    %v39 = vld [vmem:[#allocation2] sm:$0xff]
    %v40 = vld [vmem:[#allocation2 + $0x8] sm:$0xff]
    %v41 = vld [vmem:[#allocation2 + $0x10] sm:$0xff]
    %v42 = vld [vmem:[#allocation2 + $0x18] sm:$0xff]
    %v43 = vld [vmem:[#allocation5] sm:$0xf]
    %vm44 = vcmp.ne.s32.totalorder %v43, 4294967295
    %v45 = vsel %vm44, %v43, 0
    %v46 = vrot.slane %v39, 4
    %v47 = vmax.f32 %v39, %v46
    %v48 = vrot.slane %v47, 2
    %v49 = vmax.f32 %v47, %v48
    %v50 = vrot.slane %v49, 1
    %v51 = vmax.f32 %v49, %v50
    %v52 = vrot.slane %v40, 4
    %v53 = vmax.f32 %v40, %v52
    %v54 = vrot.slane %v53, 2
    %v55 = vmax.f32 %v53, %v54
    %v56 = vrot.slane %v55, 1
    %v57 = vmax.f32 %v55, %v56
    %v58 = vrot.slane %v41, 4
    %v59 = vmax.f32 %v41, %v58
    %v60 = vrot.slane %v59, 2
    %v61 = vmax.f32 %v59, %v60
    %v62 = vrot.slane %v61, 1
    %v63 = vmax.f32 %v61, %v62
    %v64 = vrot.slane %v42, 4
    %v65 = vmax.f32 %v42, %v64
    %v66 = vrot.slane %v65, 2
    %v67 = vmax.f32 %v65, %v66
    %v68 = vrot.slane %v67, 1
    %v69 = vmax.f32 %v67, %v68
    %v70 = vsub.f32 %v39, %v51
    %v71 = vsub.f32 %v40, %v57
    %v72 = vsub.f32 %v41, %v63
    %v73 = vsub.f32 %v42, %v69
    %v74 = vmul.f32 %v70, 1.442695
    %v75 = vpow.pop %v74
    %v76 = vmul.f32 %v71, 1.442695
    %v77 = vpow.pop %v76
    %v78 = vmul.f32 %v72, 1.442695
    %v79 = vpow.pop %v78
    %v80 = vmul.f32 %v73, 1.442695
    %v81 = vpow.pop %v80
    %v82 = vrot.slane %v75, 4
    %v83 = vadd.f32 %v75, %v82
    %v84 = vrot.slane %v83, 2
    %v85 = vadd.f32 %v83, %v84
    %v86 = vrot.slane %v85, 1
    %v87 = vadd.f32 %v85, %v86
    %v88 = vrot.slane %v77, 4
    %v89 = vadd.f32 %v77, %v88
    %v90 = vrot.slane %v89, 2
    %v91 = vadd.f32 %v89, %v90
    %v92 = vrot.slane %v91, 1
    %v93 = vadd.f32 %v91, %v92
    %v94 = vrot.slane %v79, 4
    %v95 = vadd.f32 %v79, %v94
    %v96 = vrot.slane %v95, 2
    %v97 = vadd.f32 %v95, %v96
    %v98 = vrot.slane %v97, 1
    %v99 = vadd.f32 %v97, %v98
    %v100 = vrot.slane %v81, 4
    %v101 = vadd.f32 %v81, %v100
    %v102 = vrot.slane %v101, 2
    %v103 = vadd.f32 %v101, %v102
    %v104 = vrot.slane %v103, 1
    %v105 = vadd.f32 %v103, %v104
    %v106 = vlaneseq
    %v107 = vshrl.u32 %v106, 7
    %v108 = vlaneseq
    %v109 = vshrl.u32 %v108, 7
    %v110 = vsub.s32 0, %v109
    %v111 = vrot.slane %v45, %v110
    %v112 = vlaneseq
    %v113 = vshrl.u32 %v112, 7
    %v114 = vsub.s32 1, %v113
    %v115 = vrot.slane %v45, %v114
    %v116 = vlaneseq
    %v117 = vshrl.u32 %v116, 7
    %v118 = vsub.s32 2, %v117
    %v119 = vrot.slane %v45, %v118
    %v120 = vlaneseq
    %v121 = vshrl.u32 %v120, 7
    %v122 = vsub.s32 3, %v121
    %v123 = vrot.slane %v45, %v122
    %vm124 = vcmp.eq.s32.totalorder %v107, %v111
    %vm125 = vcmp.eq.s32.totalorder %v107, %v115
    %vm126 = vcmp.eq.s32.totalorder %v107, %v119
    %vm127 = vcmp.eq.s32.totalorder %v107, %v123
    %v128 = vsel %vm124, 1, 0
    %v129 = vsel %vm125, 1, 0
    %v130 = vsel %vm126, 1, 0
    %v131 = vsel %vm127, 1, 0
    %v132 = vcvt.s32.f32 %v128
    %v133 = vcvt.s32.f32 %v129
    %v134 = vcvt.s32.f32 %v130
    %v135 = vcvt.s32.f32 %v131
    %v136 = vmul.f32 %v39, %v132
    %v137 = vmul.f32 %v40, %v133
    %v138 = vmul.f32 %v41, %v134
    %v139 = vmul.f32 %v42, %v135
    %v140 = vrot.slane %v136, 4
    %v141 = vadd.f32 %v136, %v140
    %v142 = vrot.slane %v141, 2
    %v143 = vadd.f32 %v141, %v142
    %v144 = vrot.slane %v143, 1
    %v145 = vadd.f32 %v143, %v144
    %v146 = vrot.slane %v137, 4
    %v147 = vadd.f32 %v137, %v146
    %v148 = vrot.slane %v147, 2
    %v149 = vadd.f32 %v147, %v148
    %v150 = vrot.slane %v149, 1
    %v151 = vadd.f32 %v149, %v150
    %v152 = vrot.slane %v138, 4
    %v153 = vadd.f32 %v138, %v152
    %v154 = vrot.slane %v153, 2
    %v155 = vadd.f32 %v153, %v154
    %v156 = vrot.slane %v155, 1
    %v157 = vadd.f32 %v155, %v156
    %v158 = vrot.slane %v139, 4
    %v159 = vadd.f32 %v139, %v158
    %v160 = vrot.slane %v159, 2
    %v161 = vadd.f32 %v159, %v160
    %v162 = vrot.slane %v161, 1
    %v163 = vadd.f32 %v161, %v162
    %v164 = vlog2.pop %v87
    %v165 = vmul.f32 %v164, 0.6931472
    %v166 = vlog2.pop %v93
    %v167 = vmul.f32 %v166, 0.6931472
    %v168 = vlog2.pop %v99
    %v169 = vmul.f32 %v168, 0.6931472
    %v170 = vlog2.pop %v105
    %v171 = vmul.f32 %v170, 0.6931472
    %v172 = vadd.f32 %v165, %v51
    %v173 = vadd.f32 %v167, %v57
    %v174 = vadd.f32 %v169, %v63
    %v175 = vadd.f32 %v171, %v69
    %v176 = vsub.f32 %v172, %v145
    %v177 = vsub.f32 %v173, %v151
    %v178 = vsub.f32 %v174, %v157
    %v179 = vsub.f32 %v175, %v163
    %v180 = vsub.f32 %v145, %v51
    %v181 = vsub.f32 %v151, %v57
    %v182 = vsub.f32 %v157, %v63
    %v183 = vsub.f32 %v163, %v69
    %v184 = vmul.f32 %v180, 1.442695
    %v185 = vpow.pop %v184
    %v186 = vmul.f32 %v181, 1.442695
    %v187 = vpow.pop %v186
    %v188 = vmul.f32 %v182, 1.442695
    %v189 = vpow.pop %v188
    %v190 = vmul.f32 %v183, 1.442695
    %v191 = vpow.pop %v190
    %v192 = vrcp.pop %v87
    %v193 = vmul.f32 %v185, %v192
    %v194 = vrcp.pop %v93
    %v195 = vmul.f32 %v187, %v194
    %v196 = vrcp.pop %v99
    %v197 = vmul.f32 %v189, %v196
    %v198 = vrcp.pop %v105
    %v199 = vmul.f32 %v191, %v198
    %v204 = vcombine.low %v176, %v177
    %v205 = vcombine.low %v178, %v179
    %v207 = vunpack.c.l.s4 1966171168
    %v208 = vunpack.c.0.s8 %v207
    %v209 = vlaneseq
    %v210 = vshrl.u32 %v209, 7
    %v211 = vsub.s32 %v208, %v210
    %v212 = vrot.slane %v204, %v211
    %v214 = vunpack.c.l.s4 1966171168
    %v215 = vunpack.c.0.s8 %v214
    %v216 = vlaneseq
    %v217 = vshrl.u32 %v216, 7
    %v218 = vsub.s32 %v215, %v217
    %v219 = vrot.slane %v205, %v218
    %v220 = vcombine.low %v212, %v219
    %v222 = vunpack.c.l.s4 1966171168
    %v223 = vunpack.c.0.s8 %v222
    %v224 = vlaneseq
    %v225 = vshrl.u32 %v224, 7
    %v226 = vsub.s32 %v223, %v225
    %v227 = vrot.slane %v220, %v226
    %v229 = vsel %vm44, %v227, 0.0
    %v230 = vlaneseq
    %vm231 = vcmp.ge.s32.totalorder %v230, 0
    %vm232 = vcmp.lt.s32.totalorder %v230, 512
    %vm233 = vmand %vm231, %vm232
    %234 = vst.msk [vmem:[#allocation7] sm:$0xf] %vm233, %v229
    %v239 = vcombine.low %v193, %v195
    %v240 = vcombine.low %v197, %v199
    %v242 = vunpack.c.l.s4 1966171168
    %v243 = vunpack.c.0.s8 %v242
    %v244 = vlaneseq
    %v245 = vshrl.u32 %v244, 7
    %v246 = vsub.s32 %v243, %v245
    %v247 = vrot.slane %v239, %v246
    %v249 = vunpack.c.l.s4 1966171168
    %v250 = vunpack.c.0.s8 %v249
    %v251 = vlaneseq
    %v252 = vshrl.u32 %v251, 7
    %v253 = vsub.s32 %v250, %v252
    %v254 = vrot.slane %v240, %v253
    %v255 = vcombine.low %v247, %v254
    %v257 = vunpack.c.l.s4 1966171168
    %v258 = vunpack.c.0.s8 %v257
    %v259 = vlaneseq
    %v260 = vshrl.u32 %v259, 7
    %v261 = vsub.s32 %v258, %v260
    %v262 = vrot.slane %v255, %v261
    %v264 = vsel %vm44, %v262, 2.0
    %265 = vst.msk [vmem:[#allocation8] sm:$0xf] %vm233, %v264
    // Predicated region
    $region18: #{tpu_custom_call.1} parent=1 // pred_check
      _
    $region19: #{tpu_custom_call.1} parent=1 // pred_check_branch
      %267 = sbr.rel (0) target = $region21
    $region20: #{tpu_custom_call.1} parent=1 // pred_region
      %s269 = ssub.s32 64, 64
      %270 = vsyncadd [#allocation4], %s269
      %s272 = sshll.u32 [#allocation7], 4
      %s273 = int_to_ptr.vmem [resolvable:$true] %s272
      %275 = dma.vmem_to_hbm [thread:$0]  %s273, 64, %s2, [#allocation4]
    $region21: #{tpu_custom_call.1} parent=1 // pred_fallthru
      _
    // Predicated region
    $region22: #{tpu_custom_call.1} parent=1 // pred_check
      _
    $region23: #{tpu_custom_call.1} parent=1 // pred_check_branch
      %277 = sbr.rel (0) target = $region25
    $region24: #{tpu_custom_call.1} parent=1 // pred_region
      %s279 = ssub.s32 64, 64
      %280 = vsyncadd [#allocation9], %s279
      %s282 = sshll.u32 [#allocation8], 4
      %s283 = int_to_ptr.vmem [resolvable:$true] %s282
      %285 = dma.vmem_to_hbm [thread:$0]  %s283, 64, %s3, [#allocation9]
    $region25: #{tpu_custom_call.1} parent=1 // pred_fallthru
      _
    // Predicated region
    $region26: #{tpu_custom_call.1} parent=1 // pred_check
      _
    $region27: #{tpu_custom_call.1} parent=1 // pred_check_branch
      %287 = sbr.rel (0) target = $region29
    $region28: #{tpu_custom_call.1} parent=1 // pred_region
      %288 = dma.done [#allocation4], 64
    $region29: #{tpu_custom_call.1} parent=1 // pred_fallthru
      _
    // Predicated region
    $region30: #{tpu_custom_call.1} parent=1 // pred_check
      _
    $region31: #{tpu_custom_call.1} parent=1 // pred_check_branch
      %290 = sbr.rel (0) target = $region33
    $region32: #{tpu_custom_call.1} parent=1 // pred_region
      %291 = dma.done [#allocation9], 64
    $region33: #{tpu_custom_call.1} parent=1 // pred_fallthru
      _
    %292 = vsyncpa [#allocation3], 1
    %293 = vsyncpa [#allocation6], 1
    %294 = vsyncpa [#allocation4], 1
    %295 = vsyncpa [#allocation9], 1

</llo_original>
